<compile_context>
chip_gen: v7x
topology: tpu7x:2x2x1
jax: 0.10.0
libtpu: 0.0.40
codegen_flags: <defaults>
</compile_context>

<pallas_src>
import functools

import jax
import jax.numpy as jnp
from jax.experimental import pallas as pl
from jax.experimental.pallas import tpu as pltpu

TILE_BYTES = 4 * 1024 * 1024   # x bytes per grid step (x2 double-buffering)


def _round_up(n, m):
    return ((n + m - 1) // m) * m


def _pick_tile_rows(total_rows, row_bytes):
    """Rows per grid step: ~TILE_BYTES of x per step, multiple of 8 sublanes."""
    budget = max(8, TILE_BYTES // row_bytes)
    if total_rows <= 8:
        return total_rows                      # block == full array extent
    tr = max(8, min(budget, (total_rows // 8) * 8))
    # Give megacore (v7x) at least 2 grid steps when there is enough work.
    if pl.cdiv(total_rows, tr) == 1 and total_rows >= 16:
        tr = _round_up(pl.cdiv(total_rows, 2), 8)
    return tr


def _packed_kernel(w_ref, b_ref, x_ref, o_ref):
    # w_ref: (128, G) f32, VMEM-resident block-diagonal replication of W_eff
    # b_ref: (1,)     f32 in SMEM
    # x_ref: (TR, 128) lane-dense packed x tile
    # o_ref: (TR, G)
    y = jnp.dot(x_ref[...], w_ref[...], preferred_element_type=jnp.float32)
    o_ref[...] = (y + b_ref[0]).astype(o_ref.dtype)


def _rowdot_kernel(w_ref, b_ref, x_ref, o_ref):
    # w_ref: (K, 1) f32, VMEM-resident
    # b_ref: (1,)   f32 in SMEM
    # x_ref: (TB, K) tile
    # o_ref: (TB, 1)
    y = jnp.dot(x_ref[...], w_ref[...], preferred_element_type=jnp.float32)
    o_ref[...] = (y + b_ref[0]).astype(o_ref.dtype)


@functools.partial(jax.jit, static_argnames=("number_models",))
def ensemble_forward(x, params, number_models):
    """x: [B, number_models] float32 -> [B, 1] float32."""
    B, K = x.shape
    assert K == number_models
    f32 = jnp.float32

    # ---- Fold the 4 affine layers into one (forward has no nonlinearity). ----
    w1, b1 = params["fc1_w"], params["fc1_b"]     # [20, K], [20]
    wm, bm = params["fcm_w"], params["fcm_b"]     # [20, 20], [20]
    w2, b2 = params["fc2_w"], params["fc2_b"]     # [10, 20], [10]
    w5, b5 = params["fc5_w"], params["fc5_b"]     # [1, 10],  [1]
    w_eff = (w1.T @ wm.T @ w2.T @ w5.T).astype(f32)                    # [K, 1]
    b_eff = (((b1 @ wm.T + bm) @ w2.T + b2) @ w5.T + b5).astype(f32)   # [1]

    cost = pl.CostEstimate(flops=2 * B * K, transcendentals=0,
                           bytes_accessed=4 * B * K + 4 * B)
    cparams = pltpu.CompilerParams(dimension_semantics=("parallel",),
                                   vmem_limit_bytes=32 * 1024 * 1024)

    if K <= 128 and 128 % K == 0:
        # ---- Lane-dense packed path (typical: small ensembles). ----
        G = 128 // K                      # original rows per packed 128-lane row
        Bp = _round_up(B, G)              # minimal row pad (< G rows) so the
        xp = x if Bp == B else jnp.pad(x, ((0, Bp - B), (0, 0)))  # reshape is exact
        R = (Bp * K) // 128
        xpk = xp.reshape(R, 128)          # free row-major reshape (contiguous)
        # Block-diagonal weight: packed_row @ w_pack gives G per-row dots at once.
        w_pack = jnp.kron(jnp.eye(G, dtype=f32), w_eff)            # (128, G)

        TR = _pick_tile_rows(R, 128 * 4)
        out = pl.pallas_call(
            _packed_kernel,
            out_shape=jax.ShapeDtypeStruct((R, G), f32),
            grid=(pl.cdiv(R, TR),),
            in_specs=[
                pl.BlockSpec((128, G), lambda i: (0, 0)),             # W (resident)
                pl.BlockSpec(memory_space=pltpu.MemorySpace.SMEM),    # b scalar
                pl.BlockSpec((TR, 128), lambda i: (i, 0)),            # packed x
            ],
            out_specs=pl.BlockSpec((TR, G), lambda i: (i, 0)),
            compiler_params=cparams,
            cost_estimate=cost,
        )(w_pack, b_eff, xpk)
        # (R, G) row-major flatten restores original row order; padded rows
        # evaluate to b_eff and are discarded by the [:B] slice.
        return out.reshape(Bp, 1)[:B]

    # ---- Fallback path: K does not divide 128, or K > 128. ----
    # TODO(synk): for 8 < K < 128 with 128 % K != 0 (e.g. K=20) a feature-pad
    # to the next power of two + the packed path above would restore full lane
    # occupancy at the cost of one extra dense copy of x.
    TB = _pick_tile_rows(B, _round_up(K, 128) * 4)
    out = pl.pallas_call(
        _rowdot_kernel,
        out_shape=jax.ShapeDtypeStruct((B, 1), f32),
        grid=(pl.cdiv(B, TB),),
        in_specs=[
            pl.BlockSpec((K, 1), lambda i: (0, 0)),               # W_eff (resident)
            pl.BlockSpec(memory_space=pltpu.MemorySpace.SMEM),    # b scalar
            pl.BlockSpec((TB, K), lambda i: (i, 0)),              # x tile
        ],
        out_specs=pl.BlockSpec((TB, 1), lambda i: (i, 0)),
        compiler_params=cparams,
        cost_estimate=cost,
    )(w_eff, b_eff, x)
    return out


def init_params(key, number_models):
    """Deterministic init mimicking nn.Linear default (uniform +-1/sqrt(fan_in))."""
    dims = [(20, number_models, "fc1"),
            (20, 20, "fcm"),
            (10, 20, "fc2"),
            (1, 10, "fc5")]
    params = {}
    for out_d, in_d, name in dims:
        key, kw, kb = jax.random.split(key, 3)
        bound = 1.0 / jnp.sqrt(jnp.float32(in_d))
        params[f"{name}_w"] = jax.random.uniform(
            kw, (out_d, in_d), jnp.float32, -bound, bound)
        params[f"{name}_b"] = jax.random.uniform(
            kb, (out_d,), jnp.float32, -bound, bound)
    return params


def reference_forward(x, params):
    h = x @ params["fc1_w"].T + params["fc1_b"]
    h = h @ params["fcm_w"].T + params["fcm_b"]
    h = h @ params["fc2_w"].T + params["fc2_b"]
    return h @ params["fc5_w"].T + params["fc5_b"]


if __name__ == "__main__":
    key = jax.random.PRNGKey(0)

    # --- Packed (lane-dense) path: K = 4 (128 % K == 0), small batch. ---
    number_models = 4
    key, kp, kx = jax.random.split(key, 3)
    params = init_params(kp, number_models)
    x_small = jax.random.normal(kx, (8, number_models), jnp.float32)
    out = jax.block_until_ready(ensemble_forward(x_small, params, number_models))
    ref = reference_forward(x_small, params)
    assert out.shape == (8, 1), out.shape
    assert jnp.allclose(out, ref, atol=1e-4, rtol=1e-4)

    # --- Packed path with a multi-step grid + ragged last block (B = 600). ---
    key, kx2 = jax.random.split(key)
    x_big = jax.random.normal(kx2, (600, number_models), jnp.float32)
    out2 = jax.block_until_ready(ensemble_forward(x_big, params, number_models))
    ref2 = reference_forward(x_big, params)
    assert out2.shape == (600, 1), out2.shape
    assert jnp.allclose(out2, ref2, atol=1e-4, rtol=1e-4)

    # --- Fallback path: K = 20 (does not divide 128), ragged grid (B = 37). ---
    number_models_fb = 20
    key, kp2, kx3 = jax.random.split(key, 3)
    params_fb = init_params(kp2, number_models_fb)
    x_fb = jax.random.normal(kx3, (37, number_models_fb), jnp.float32)
    out3 = jax.block_until_ready(ensemble_forward(x_fb, params_fb, number_models_fb))
    ref3 = reference_forward(x_fb, params_fb)
    assert out3.shape == (37, 1), out3.shape
    assert jnp.allclose(out3, ref3, atol=1e-4, rtol=1e-4)

    print("KERNEL_OK")
</pallas_src>

<mosaic_0001>
module attributes {stable_mosaic.version = 11 : i64} {
  func.func @_packed_kernel(%arg0: i32, %arg1: memref<128x32xf32, #tpu.memory_space<vmem>>, %arg2: memref<1xf32, #tpu.memory_space<smem>>, %arg3: memref<1x128xf32, #tpu.memory_space<vmem>>, %arg4: memref<1x32xf32, #tpu.memory_space<vmem>>) attributes {dimension_semantics = [#tpu.dimension_semantics<parallel>], iteration_bounds = array<i64: 1>, scalar_prefetch = 0 : i64, scratch_operands = 0 : i64, tpu.core_type = #tpu.core_type<tc>, window_params = [{pipeline_mode = #tpu.pipeline_mode<synchronous>, transform_indices = @transform_0, window_bounds = array<i64: 128, 32>}, {transform_indices = @transform_1, window_bounds = array<i64: 1>}, {transform_indices = @transform_2, window_bounds = array<i64: 1, 128>}, {transform_indices = @transform_3, window_bounds = array<i64: 1, 32>}]} {
    %c0 = arith.constant 0 : index
    %c0_0 = arith.constant 0 : index
    %0 = vector.load %arg3[%c0, %c0_0] : memref<1x128xf32, #tpu.memory_space<vmem>>, vector<1x128xf32>
    %c0_1 = arith.constant 0 : index
    %c0_2 = arith.constant 0 : index
    %1 = vector.load %arg1[%c0_1, %c0_2] : memref<128x32xf32, #tpu.memory_space<vmem>>, vector<128x32xf32>
    %cst = arith.constant dense<0.000000e+00> : vector<1x32xf32>
    %2 = tpu.matmul %0, %1, %cst {dimension_numbers = #tpu.dot_dimension_numbers<[1], [0], [0], [1], [0, 0, 1, 1], [], []>} : vector<1x128xf32>, vector<128x32xf32>, vector<1x32xf32> -> vector<1x32xf32>
    %c0_3 = arith.constant 0 : index
    %3 = memref.load %arg2[%c0_3] : memref<1xf32, #tpu.memory_space<smem>>
    %4 = vector.broadcast %3 : f32 to vector<1x32xf32>
    %5 = arith.addf %2, %4 : vector<1x32xf32>
    %c0_4 = arith.constant 0 : index
    %c0_5 = arith.constant 0 : index
    %6 = vector.load %arg4[%c0_4, %c0_5] : memref<1x32xf32, #tpu.memory_space<vmem>>, vector<1x32xf32>
    tpu.vector_store %arg4[%c0_4, %c0_5], %5 {strides = array<i32>} : memref<1x32xf32, #tpu.memory_space<vmem>>, vector<1x32xf32>,
    return
  }
  func.func @transform_0(%arg0: i32) -> (i32, i32) {
    %c0_i32 = arith.constant 0 : i32
    %c0_i32_0 = arith.constant 0 : i32
    %c0_i32_1 = arith.constant 0 : i32
    return %c0_i32, %c0_i32_0 : i32, i32
  }
  func.func @transform_1(%arg0: i32) -> i32 {
    %c0_i32 = arith.constant 0 : i32
    %c0_i32_0 = arith.constant 0 : i32
    return %c0_i32 : i32
  }
  func.func @transform_2(%arg0: i32) -> (i32, i32) {
    %c0_i32 = arith.constant 0 : i32
    %c0_i32_0 = arith.constant 0 : i32
    return %arg0, %c0_i32 : i32, i32
  }
  func.func @transform_3(%arg0: i32) -> (i32, i32) {
    %c0_i32 = arith.constant 0 : i32
    %c0_i32_0 = arith.constant 0 : i32
    return %arg0, %c0_i32 : i32, i32
  }
}

</mosaic_0001>

<llo_original>
// kernel: ensemble_forward.1
$region0: #{ensemble_forward.1}
  #allocation0 [shape = 'u32[]', space=smem, size = 0x4, offset = 0x4, fixed_abs, tag = 'smem constant byte address 0x4 - core index']
  #allocation1 [shape = 'u32[144,128]{1,0:T(1,128)}', space=vmem, size = 0x12000, scoped, tag = 'internal scratch']
  #allocation2 [shape = 'f32[1]{0:T(128)S(6)}', space=smem, size = 0x200, scoped, tag = 'scoped memory for ensemble_forward.1']
  %s0 = inlined_call_operand.vmem [shape: f32[128,32], index: 0, kind: input, shape index: {}]
  %s1 = inlined_call_operand.<no memory space> [shape: f32[1], index: 1, kind: input, shape index: {}]
  %s2 = inlined_call_operand.vmem [shape: f32[1,128], index: 2, kind: input, shape index: {}]
  %s3 = inlined_call_operand.vmem [shape: f32[1,32], index: 3, kind: output, shape index: {}]
  %s4 = sld [smem:[#allocation0]]
  $region22: #{ensemble_forward.1} parent=0
    _
  %s6 = ssub.s32 1, %s4
  %s7 = scalar_select 0, %s6, %s4
  %8 = sst [smem:[#allocation2]] %s1
  // Predicated region
  $region2: #{ensemble_forward.1} parent=0 // pred_check
    _
  $region3: #{ensemble_forward.1} parent=0 // pred_check_branch
    %10 = sbr.rel (0) target = $region5
  $region4: #{ensemble_forward.1} parent=0 // pred_region
    _
  $region5: #{ensemble_forward.1} parent=0 // pred_fallthru
    _
  // Predicated region
  $region6: #{ensemble_forward.1} parent=0 // pred_check
    _
  $region7: #{ensemble_forward.1} parent=0 // pred_check_branch
    %12 = sbr.rel (0) target = $region9
  $region8: #{ensemble_forward.1} parent=0 // pred_region
    _
  $region9: #{ensemble_forward.1} parent=0 // pred_fallthru
    _
  // Predicated region
  $region10: #{ensemble_forward.1} parent=0 // pred_check
    _
  $region11: #{ensemble_forward.1} parent=0 // pred_check_branch
    %14 = sbr.rel (0) target = $region13
  $region12: #{ensemble_forward.1} parent=0 // pred_region
    _
  $region13: #{ensemble_forward.1} parent=0 // pred_fallthru
    _
  %v15 = vld [vmem:[%s2] sm:$0x1]
  %v16 = vld [vmem:[%s0] sm:$0xff]
  %v17 = vld [vmem:[%s0 + $0x8] sm:$0xff]
  %v18 = vld [vmem:[%s0 + $0x10] sm:$0xff]
  %v19 = vld [vmem:[%s0 + $0x18] sm:$0xff]
  %v20 = vld [vmem:[%s0 + $0x20] sm:$0xff]
  %v21 = vld [vmem:[%s0 + $0x28] sm:$0xff]
  %v22 = vld [vmem:[%s0 + $0x30] sm:$0xff]
  %v23 = vld [vmem:[%s0 + $0x38] sm:$0xff]
  %v24 = vld [vmem:[%s0 + $0x40] sm:$0xff]
  %v25 = vld [vmem:[%s0 + $0x48] sm:$0xff]
  %v26 = vld [vmem:[%s0 + $0x50] sm:$0xff]
  %v27 = vld [vmem:[%s0 + $0x58] sm:$0xff]
  %v28 = vld [vmem:[%s0 + $0x60] sm:$0xff]
  %v29 = vld [vmem:[%s0 + $0x68] sm:$0xff]
  %v30 = vld [vmem:[%s0 + $0x70] sm:$0xff]
  %v31 = vld [vmem:[%s0 + $0x78] sm:$0xff]
  %s32 = sld [smem:[#allocation2]]
  %v33 = vstv %s32
  %34 = vmatprep.subr.mxu0 0.0
  %35 = vmatpush1.msra.mxu0 %v16
  %36 = vmatprep.subr.mxu0 0.0
  %37 = vmatpush1.msra.mxu0 %v17
  %38 = vmatprep.subr.mxu0 0.0
  %39 = vmatpush1.msra.mxu0 %v18
  %40 = vmatprep.subr.mxu0 0.0
  %41 = vmatpush1.msra.mxu0 %v19
  %42 = vmatprep.subr.mxu0 0.0
  %43 = vmatpush1.msra.mxu0 %v20
  %44 = vmatprep.subr.mxu0 0.0
  %45 = vmatpush1.msra.mxu0 %v21
  %46 = vmatprep.subr.mxu0 0.0
  %47 = vmatpush1.msra.mxu0 %v22
  %48 = vmatprep.subr.mxu0 0.0
  %49 = vmatpush1.msra.mxu0 %v23
  %50 = vmatprep.subr.mxu0 0.0
  %51 = vmatpush1.msra.mxu0 %v24
  %52 = vmatprep.subr.mxu0 0.0
  %53 = vmatpush1.msra.mxu0 %v25
  %54 = vmatprep.subr.mxu0 0.0
  %55 = vmatpush1.msra.mxu0 %v26
  %56 = vmatprep.subr.mxu0 0.0
  %57 = vmatpush1.msra.mxu0 %v27
  %58 = vmatprep.subr.mxu0 0.0
  %59 = vmatpush1.msra.mxu0 %v28
  %60 = vmatprep.subr.mxu0 0.0
  %61 = vmatpush1.msra.mxu0 %v29
  %62 = vmatprep.subr.mxu0 0.0
  %63 = vmatpush1.msra.mxu0 %v30
  %64 = vmatprep.subr.mxu0 0.0
  %65 = vmatpush1.msra.mxu0 %v31
  %66 = vmatprep.subr.mxu0 0.0
  %67 = vmatpush1.msra.mxu0 0.0
  %68 = vmatprep.subr.mxu0 0.0
  %69 = vmatpush1.msra.mxu0 0.0
  %70 = vmatprep.subr.mxu0 0.0
  %71 = vmatpush1.msra.mxu0 0.0
  %72 = vmatprep.subr.mxu0 0.0
  %73 = vmatpush1.msra.mxu0 0.0
  %74 = vmatprep.subr.mxu0 0.0
  %75 = vmatpush1.msra.mxu0 0.0
  %76 = vmatprep.subr.mxu0 0.0
  %77 = vmatpush1.msra.mxu0 0.0
  %78 = vmatprep.subr.mxu0 0.0
  %79 = vmatpush1.msra.mxu0 0.0
  %80 = vmatprep.subr.mxu0 0.0
  %81 = vmatpush1.msra.mxu0 0.0
  %82 = vmatprep.subr.mxu0 0.0
  %83 = vmatpush1.msra.mxu0 0.0
  %84 = vmatprep.subr.mxu0 0.0
  %85 = vmatpush1.msra.mxu0 0.0
  %86 = vmatprep.subr.mxu0 0.0
  %87 = vmatpush1.msra.mxu0 0.0
  %88 = vmatprep.subr.mxu0 0.0
  %89 = vmatpush1.msra.mxu0 0.0
  %90 = vmatprep.subr.mxu0 0.0
  %91 = vmatpush1.msra.mxu0 0.0
  %92 = vmatprep.subr.mxu0 0.0
  %93 = vmatpush1.msra.mxu0 0.0
  %94 = vmatprep.subr.mxu0 0.0
  %95 = vmatpush1.msra.mxu0 0.0
  %96 = vmatprep.subr.mxu0 0.0
  %97 = vmatpush1.msra.mxu0 0.0
  %98 = vmatprep.mubr.f32.mxu0 0.0
  %99 = vmatmul.mubr.f32.gmra.mrb[0].mxu0 %v15
  %v100 = vpop.f32.mrb[0].mxu0
  %v101 = vadd.f32 %v33, %v100
  %v102 = vpop.f32.mrb[0].mxu0
  %103 = vdwg.mxu0
  %vm104 = vcmask 253952
  %105 = vst.msk [vmem:[%s3] sm:$0x1] %vm104, %v101
  // Predicated region
  $region14: #{ensemble_forward.1} parent=0 // pred_check
    _
  $region15: #{ensemble_forward.1} parent=0 // pred_check_branch
    %107 = sbr.rel (0) target = $region17
  $region16: #{ensemble_forward.1} parent=0 // pred_region
    _
  $region17: #{ensemble_forward.1} parent=0 // pred_fallthru
    _
  // Predicated region
  $region18: #{ensemble_forward.1} parent=0 // pred_check
    _
  $region19: #{ensemble_forward.1} parent=0 // pred_check_branch
    %109 = sbr.rel (0) target = $region21
  $region20: #{ensemble_forward.1} parent=0 // pred_region
    _
  $region21: #{ensemble_forward.1} parent=0 // pred_fallthru
    _

</llo_original>
